<compile_context>
chip_gen: v6e
topology: v6e:2x2x1
jax: 0.10.0
libtpu: 0.0.40
codegen_flags: <defaults>
</compile_context>

<pallas_src>
import jax
import jax.numpy as jnp
from jax.experimental import pallas as pl
from jax.experimental.pallas import tpu as pltpu

EPS = 1e-5
LANE = 128
TILE_M = 512                        # sweep 256..1024; 512 fits all generations
VMEM_LIMIT = 48 * 1024 * 1024       # < 64 MiB physical on v7x -> compiler headroom


def _round_up(x, m):
    return ((x + m - 1) // m) * m


def _pad2d(a, rows, cols, value=0.0):
    """Zero-pad a 2-D array to (rows, cols); no-op (no copy) if already aligned."""
    r, c = a.shape
    if r == rows and c == cols:
        return a
    return jnp.pad(a, ((0, rows - r), (0, cols - c)), constant_values=value)


# ---------------------------------------------------------------------------
# Pass 1 kernel: tiled GEMM (bf16 MXU, f32 acc) + per-channel sum / sum-sq.
# Stats accumulate in an (8, Co_p) f32 VMEM scratch and are written once per
# core (parallel axis) at the last step of the arbitrary (M) axis.
# ---------------------------------------------------------------------------
def _gemm_stats_kernel(p_ref, w_ref, y_ref, sum_ref, ssq_ref, sum_acc, ssq_acc):
    i = pl.program_id(1)

    @pl.when(i == 0)
    def _():
        sum_acc[...] = jnp.zeros_like(sum_acc)
        ssq_acc[...] = jnp.zeros_like(ssq_acc)

    y = jnp.dot(p_ref[...], w_ref[...], preferred_element_type=jnp.float32)
    y_ref[...] = y.astype(y_ref.dtype)          # bf16 store: halves y HBM traffic

    # Spread the row-reduction across 8 sublanes; padded rows are zero so the
    # stats (divided later by the true M) are unaffected.
    yg = y.reshape(y.shape[0] // 8, 8, y.shape[1])
    sum_acc[...] += jnp.sum(yg, axis=0)
    ssq_acc[...] += jnp.sum(yg * yg, axis=0)

    @pl.when(i == pl.num_programs(1) - 1)
    def _():                                    # write stats once per core
        sum_ref[...] = sum_acc[...]
        ssq_ref[...] = ssq_acc[...]


# ---------------------------------------------------------------------------
# Pass 2 kernel: merge per-core stats, fold BatchNorm to scale/shift,
# optional residual add, optional ReLU.
# ---------------------------------------------------------------------------
def _make_bn_epilogue_kernel(apply_relu: bool, has_residual: bool, m_rows: int):
    inv_m = 1.0 / float(m_rows)

    def kernel(*refs):
        if has_residual:
            y_ref, sum_ref, ssq_ref, g_ref, b_ref, res_ref, out_ref = refs
        else:
            y_ref, sum_ref, ssq_ref, g_ref, b_ref, out_ref = refs

        csum = jnp.sum(sum_ref[...], axis=0, keepdims=True)   # merge core rows
        cssq = jnp.sum(ssq_ref[...], axis=0, keepdims=True)
        mean = csum * inv_m
        var = jnp.maximum(cssq * inv_m - mean * mean, 0.0)
        scale = g_ref[...] * jax.lax.rsqrt(var + EPS)          # rsqrt -> EUP slot
        shift = b_ref[...] - mean * scale
        out = y_ref[...].astype(jnp.float32) * scale + shift
        if has_residual:
            out = out + res_ref[...].astype(jnp.float32)
        if apply_relu:
            out = jnp.maximum(out, 0.0)
        out_ref[...] = out.astype(out_ref.dtype)

    return kernel


# ---------------------------------------------------------------------------
# Wrapper: one conv + BN (+residual, +ReLU) unit as two tiled pallas_calls.
# Returns the PADDED (M_p, Co_p) result so callers can chain without re-padding.
# ---------------------------------------------------------------------------
def conv_bn_pallas(patches, w_mat, gamma, beta, residual=None, relu=False,
                   out_dtype=jnp.float32):
    M, Kd = patches.shape
    Co = w_mat.shape[1]

    tile_m = min(TILE_M, _round_up(M, 8))
    M_p = _round_up(M, tile_m)
    Kd_p = _round_up(Kd, LANE)
    Co_p = _round_up(Co, LANE)                  # lane-dense stores
    n_tiles = M_p // tile_m
    n_core = 2 if (n_tiles % 2 == 0 and n_tiles >= 2) else 1   # v7x megacore split
    n_inner = n_tiles // n_core

    # bf16 operands for the MXU; padding rows/cols are zero so BN stats
    # (divided by the true M) and the GEMM result are unaffected.
    p = _pad2d(patches.astype(jnp.bfloat16), M_p, Kd_p)
    w = _pad2d(w_mat.astype(jnp.bfloat16), Kd_p, Co_p)
    g = _pad2d(gamma.reshape(1, Co).astype(jnp.float32), 1, Co_p, value=1.0)
    b = _pad2d(beta.reshape(1, Co).astype(jnp.float32), 1, Co_p)

    # ---- pass 1: GEMM + per-core channel stats ----
    gemm_cost = pl.CostEstimate(
        flops=2 * M_p * Kd_p * Co_p,
        transcendentals=0,
        bytes_accessed=(M_p * Kd_p * 2 + Kd_p * Co_p * 2 + M_p * Co_p * 2
                        + 2 * n_core * 8 * Co_p * 4))
    y, csum, cssq = pl.pallas_call(
        _gemm_stats_kernel,
        out_shape=(jax.ShapeDtypeStruct((M_p, Co_p), jnp.bfloat16),
                   jax.ShapeDtypeStruct((n_core * 8, Co_p), jnp.float32),
                   jax.ShapeDtypeStruct((n_core * 8, Co_p), jnp.float32)),
        grid=(n_core, n_inner),
        in_specs=[pl.BlockSpec((tile_m, Kd_p), lambda c, i: (c * n_inner + i, 0)),
                  # TODO(synk): pipeline_mode=pl.Buffered(1) on this resident
                  # weight block would avoid double-buffering the weight tile.
                  pl.BlockSpec((Kd_p, Co_p), lambda c, i: (0, 0))],
        out_specs=(pl.BlockSpec((tile_m, Co_p), lambda c, i: (c * n_inner + i, 0)),
                   pl.BlockSpec((8, Co_p), lambda c, i: (c, 0)),
                   pl.BlockSpec((8, Co_p), lambda c, i: (c, 0))),
        scratch_shapes=[pltpu.VMEM((8, Co_p), jnp.float32),
                        pltpu.VMEM((8, Co_p), jnp.float32)],
        compiler_params=pltpu.CompilerParams(
            dimension_semantics=("parallel", "arbitrary"),
            vmem_limit_bytes=VMEM_LIMIT),
        cost_estimate=gemm_cost,
    )(p, w)

    # ---- pass 2: folded-BN epilogue over parallel M tiles ----
    inputs = [y, csum, cssq, g, b]
    in_specs = [pl.BlockSpec((tile_m, Co_p), lambda i: (i, 0)),
                pl.BlockSpec((n_core * 8, Co_p), lambda i: (0, 0)),
                pl.BlockSpec((n_core * 8, Co_p), lambda i: (0, 0)),
                pl.BlockSpec((1, Co_p), lambda i: (0, 0)),
                pl.BlockSpec((1, Co_p), lambda i: (0, 0))]
    res_bytes = 0
    if residual is not None:
        if residual.shape == (M_p, Co_p):
            res = residual.astype(jnp.bfloat16)   # already-padded pass-through
        elif residual.shape[0] == M:
            res = _pad2d(residual.astype(jnp.bfloat16), M_p, Co_p)
        else:
            raise ValueError(
                f"residual rows {residual.shape[0]} do not match conv rows {M}")
        inputs.append(res)
        in_specs.append(pl.BlockSpec((tile_m, Co_p), lambda i: (i, 0)))
        res_bytes = M_p * Co_p * 2

    out_bytes = M_p * Co_p * jnp.dtype(out_dtype).itemsize
    epi_cost = pl.CostEstimate(
        flops=5 * M_p * Co_p,
        transcendentals=Co_p,
        bytes_accessed=(M_p * Co_p * 2 + out_bytes + res_bytes
                        + (2 * n_core * 8 + 2) * Co_p * 4))

    kernel = _make_bn_epilogue_kernel(relu, residual is not None, M)
    out = pl.pallas_call(
        kernel,
        out_shape=jax.ShapeDtypeStruct((M_p, Co_p), out_dtype),
        grid=(n_tiles,),
        in_specs=in_specs,
        out_specs=pl.BlockSpec((tile_m, Co_p), lambda i: (i, 0)),
        compiler_params=pltpu.CompilerParams(
            dimension_semantics=("parallel",),     # shards across v7x TCs
            vmem_limit_bytes=VMEM_LIMIT),
        cost_estimate=epi_cost,
    )(*inputs)
    return out


# ---------------------------------------------------------------------------
# JAX glue: im2col + weight reshape + block wiring
# ---------------------------------------------------------------------------
def im2col(x_nhwc, ksize, stride, padding):
    """Returns (patches (M, K*K*C), Ho, Wo); patch column order is (kh, kw, c)."""
    N, H, W, C = x_nhwc.shape
    xp = jnp.pad(x_nhwc, ((0, 0), (padding, padding), (padding, padding), (0, 0)))
    Ho = (H + 2 * padding - ksize) // stride + 1
    Wo = (W + 2 * padding - ksize) // stride + 1
    cols = []
    for kh in range(ksize):
        for kw in range(ksize):
            cols.append(
                xp[:, kh:kh + Ho * stride:stride, kw:kw + Wo * stride:stride, :])
    patches = jnp.stack(cols, axis=3)  # (N, Ho, Wo, K*K, C)
    return patches.reshape(N * Ho * Wo, ksize * ksize * C), Ho, Wo


def reshape_weight(w_oihw):
    """PyTorch (Cout, Cin, Kh, Kw) -> GEMM matrix (Kh*Kw*Cin, Cout)."""
    co, ci, kh, kw = w_oihw.shape
    return jnp.transpose(w_oihw, (2, 3, 1, 0)).reshape(kh * kw * ci, co)


def basic_block_forward(x_nchw, params, stride, in_c, out_c):
    # NCHW -> NHWC, cast once to bf16 so im2col patches materialize in bf16.
    x = jnp.transpose(x_nchw, (0, 2, 3, 1)).astype(jnp.bfloat16)
    N, H, W, _ = x.shape

    # conv1 (3x3, stride) + bn1 + relu  — intermediate kept in bf16.
    # TODO(synk): 9-accumulated-GEMM in-kernel conv to drop the im2col HBM copy.
    p1, Ho, Wo = im2col(x, 3, stride, 1)
    out1_p = conv_bn_pallas(p1, reshape_weight(params["w1"]),
                            params["g1"], params["b1"], relu=True,
                            out_dtype=jnp.bfloat16)
    M1 = N * Ho * Wo
    out1_nhwc = out1_p[:M1, :out_c].reshape(N, Ho, Wo, out_c)     # bf16

    # shortcut — module's (non-standard) condition kept verbatim.
    if stride != 2 or in_c != out_c:
        ps, _, _ = im2col(x, 1, stride, 0)
        # Padded bf16 result is fed straight to conv2's residual (no re-pad).
        # TODO(synk): fuse the 1x1 shortcut GEMM+BN into conv2's kernels.
        shortcut = conv_bn_pallas(ps, reshape_weight(params["ws"]),
                                  params["gs"], params["bs"], relu=False,
                                  out_dtype=jnp.bfloat16)
    else:
        # identity shortcut (only shape-valid when spatial dims match, exactly
        # as in the PyTorch module)
        shortcut = x.reshape(N * H * W, in_c)

    # conv2 (3x3, stride 1) + bn2 + residual add + relu — final output f32.
    p2, Ho2, Wo2 = im2col(out1_nhwc, 3, 1, 1)
    out2_p = conv_bn_pallas(p2, reshape_weight(params["w2"]),
                            params["g2"], params["b2"],
                            residual=shortcut, relu=True,
                            out_dtype=jnp.float32)
    M2 = N * Ho2 * Wo2
    out_nhwc = out2_p[:M2, :out_c].reshape(N, Ho2, Wo2, out_c)
    return jnp.transpose(out_nhwc, (0, 3, 1, 2))  # back to NCHW


# ---------------------------------------------------------------------------
# Deterministic parameter init (shapes from BasicBlock.__init__)
# ---------------------------------------------------------------------------
def init_params(key, in_c, out_c, stride):
    ks = jax.random.split(key, 9)
    p = {
        "w1": 0.1 * jax.random.normal(ks[0], (out_c, in_c, 3, 3), jnp.float32),
        "g1": 1.0 + 0.1 * jax.random.normal(ks[1], (out_c,), jnp.float32),
        "b1": 0.1 * jax.random.normal(ks[2], (out_c,), jnp.float32),
        "w2": 0.1 * jax.random.normal(ks[3], (out_c, out_c, 3, 3), jnp.float32),
        "g2": 1.0 + 0.1 * jax.random.normal(ks[4], (out_c,), jnp.float32),
        "b2": 0.1 * jax.random.normal(ks[5], (out_c,), jnp.float32),
    }
    if stride != 2 or in_c != out_c:
        p["ws"] = 0.1 * jax.random.normal(ks[6], (out_c, in_c, 1, 1), jnp.float32)
        p["gs"] = 1.0 + 0.1 * jax.random.normal(ks[7], (out_c,), jnp.float32)
        p["bs"] = 0.1 * jax.random.normal(ks[8], (out_c,), jnp.float32)
    return p


# ---------------------------------------------------------------------------
# Pure-JAX reference. Models the same numerics as the kernels: bf16 conv
# operands with f32 accumulation, BN stats from the f32 conv result,
# normalization applied to the bf16-stored result, bf16 intermediate
# activations / residual, f32 final output. BN / add / relu math stays f32.
# ---------------------------------------------------------------------------
def ref_forward(x, params, stride, in_c, out_c):
    def conv(y, w, s, pad):
        return jax.lax.conv_general_dilated(
            y.astype(jnp.bfloat16), w.astype(jnp.bfloat16), (s, s),
            [(pad, pad), (pad, pad)],
            dimension_numbers=("NCHW", "OIHW", "NCHW"),
            preferred_element_type=jnp.float32)

    def bn(y, g, b):
        mean = jnp.mean(y, axis=(0, 2, 3), keepdims=True)
        var = jnp.mean(y * y, axis=(0, 2, 3), keepdims=True) - mean * mean
        yq = y.astype(jnp.bfloat16).astype(jnp.float32)   # kernel stores y in bf16
        return ((yq - mean) * jax.lax.rsqrt(var + EPS)
                * g.reshape(1, -1, 1, 1) + b.reshape(1, -1, 1, 1))

    out1 = jax.nn.relu(bn(conv(x, params["w1"], stride, 1),
                          params["g1"], params["b1"]))
    out1 = out1.astype(jnp.bfloat16).astype(jnp.float32)   # bf16 intermediate
    out = bn(conv(out1, params["w2"], 1, 1), params["g2"], params["b2"])
    if stride != 2 or in_c != out_c:
        sc = bn(conv(x, params["ws"], stride, 0), params["gs"], params["bs"])
        sc = sc.astype(jnp.bfloat16).astype(jnp.float32)    # bf16 residual
    else:
        sc = x
    return jax.nn.relu(out + sc)


if __name__ == "__main__":
    in_c, out_c, stride = 4, 8, 2
    key = jax.random.PRNGKey(0)
    kx, kp = jax.random.split(key)
    x = jax.random.normal(kx, (2, in_c, 16, 16), jnp.float32)
    params = init_params(kp, in_c, out_c, stride)

    out = basic_block_forward(x, params, stride, in_c, out_c)
    out = jax.block_until_ready(out)

    ref = ref_forward(x, params, stride, in_c, out_c)
    assert out.shape == ref.shape == (2, out_c, 8, 8), (out.shape, ref.shape)
    max_err = float(jnp.max(jnp.abs(out - ref)))
    assert jnp.allclose(out, ref, atol=5e-3, rtol=5e-3), max_err
    print("KERNEL_OK")
</pallas_src>

<mosaic_0001>
module attributes {stable_mosaic.version = 11 : i64} {
  func.func @_gemm_stats_kernel(%arg0: i32, %arg1: i32, %arg2: memref<128x128xbf16, #tpu.memory_space<vmem>>, %arg3: memref<128x128xbf16, #tpu.memory_space<vmem>>, %arg4: memref<128x128xbf16, #tpu.memory_space<vmem>>, %arg5: memref<8x128xf32, #tpu.memory_space<vmem>>, %arg6: memref<8x128xf32, #tpu.memory_space<vmem>>, %arg7: memref<8x128xf32, #tpu.memory_space<vmem>>, %arg8: memref<8x128xf32, #tpu.memory_space<vmem>>) attributes {dimension_semantics = [#tpu.dimension_semantics<parallel>, #tpu.dimension_semantics<arbitrary>], iteration_bounds = array<i64: 1, 1>, scalar_prefetch = 0 : i64, scratch_operands = 2 : i64, tpu.core_type = #tpu.core_type<tc>, window_params = [{transform_indices = @transform_0, window_bounds = array<i64: 128, 128>}, {pipeline_mode = #tpu.pipeline_mode<synchronous>, transform_indices = @transform_1, window_bounds = array<i64: 128, 128>}, {transform_indices = @transform_2, window_bounds = array<i64: 128, 128>}, {transform_indices = @transform_3, window_bounds = array<i64: 8, 128>}, {transform_indices = @transform_4, window_bounds = array<i64: 8, 128>}]} {
    %c0_i32 = arith.constant 0 : i32
    %0 = arith.cmpi eq, %arg1, %c0_i32 : i32
    %1 = arith.extui %0 : i1 to i32
    %c0_i32_0 = arith.constant 0 : i32
    %2 = arith.cmpi ne, %1, %c0_i32_0 : i32
    scf.if %2 {
      %cst_18 = arith.constant 0.000000e+00 : f32
      %21 = vector.broadcast %cst_18 : f32 to vector<8x128xf32>
      %c0_19 = arith.constant 0 : index
      %c0_20 = arith.constant 0 : index
      %22 = vector.load %arg7[%c0_19, %c0_20] : memref<8x128xf32, #tpu.memory_space<vmem>>, vector<8x128xf32>
      tpu.vector_store %arg7[%c0_19, %c0_20], %21 {strides = array<i32>} : memref<8x128xf32, #tpu.memory_space<vmem>>, vector<8x128xf32>,
      %cst_21 = arith.constant 0.000000e+00 : f32
      %23 = vector.broadcast %cst_21 : f32 to vector<8x128xf32>
      %c0_22 = arith.constant 0 : index
      %c0_23 = arith.constant 0 : index
      %24 = vector.load %arg8[%c0_22, %c0_23] : memref<8x128xf32, #tpu.memory_space<vmem>>, vector<8x128xf32>
      tpu.vector_store %arg8[%c0_22, %c0_23], %23 {strides = array<i32>} : memref<8x128xf32, #tpu.memory_space<vmem>>, vector<8x128xf32>,
    } else {
    }
    %c0 = arith.constant 0 : index
    %c0_1 = arith.constant 0 : index
    %3 = vector.load %arg2[%c0, %c0_1] : memref<128x128xbf16, #tpu.memory_space<vmem>>, vector<128x128xbf16>
    %c0_2 = arith.constant 0 : index
    %c0_3 = arith.constant 0 : index
    %4 = vector.load %arg3[%c0_2, %c0_3] : memref<128x128xbf16, #tpu.memory_space<vmem>>, vector<128x128xbf16>
    %cst = arith.constant dense<0.000000e+00> : vector<128x128xf32>
    %5 = tpu.matmul %3, %4, %cst {dimension_numbers = #tpu.dot_dimension_numbers<[1], [0], [0], [1], [0, 0, 1, 1], [], []>} : vector<128x128xbf16>, vector<128x128xbf16>, vector<128x128xf32> -> vector<128x128xf32>
    %6 = arith.truncf %5 : vector<128x128xf32> to vector<128x128xbf16>
    %c0_4 = arith.constant 0 : index
    %c0_5 = arith.constant 0 : index
    %7 = vector.load %arg4[%c0_4, %c0_5] : memref<128x128xbf16, #tpu.memory_space<vmem>>, vector<128x128xbf16>
    tpu.vector_store %arg4[%c0_4, %c0_5], %6 {strides = array<i32>} : memref<128x128xbf16, #tpu.memory_space<vmem>>, vector<128x128xbf16>,
    %8 = vector.shape_cast %5 : vector<128x128xf32> to vector<16x8x128xf32>
    %c0_6 = arith.constant 0 : index
    %c0_7 = arith.constant 0 : index
    %9 = vector.load %arg7[%c0_6, %c0_7] : memref<8x128xf32, #tpu.memory_space<vmem>>, vector<8x128xf32>
    %cst_8 = arith.constant dense<0.000000e+00> : vector<8x128xf32>
    %10 = vector.multi_reduction <add>, %8, %cst_8 [0] : vector<16x8x128xf32> to vector<8x128xf32>
    %11 = arith.addf %9, %10 : vector<8x128xf32>
    %c0_9 = arith.constant 0 : index
    %c0_10 = arith.constant 0 : index
    %12 = vector.load %arg7[%c0_9, %c0_10] : memref<8x128xf32, #tpu.memory_space<vmem>>, vector<8x128xf32>
    tpu.vector_store %arg7[%c0_9, %c0_10], %11 {strides = array<i32>} : memref<8x128xf32, #tpu.memory_space<vmem>>, vector<8x128xf32>,
    %c0_11 = arith.constant 0 : index
    %c0_12 = arith.constant 0 : index
    %13 = vector.load %arg8[%c0_11, %c0_12] : memref<8x128xf32, #tpu.memory_space<vmem>>, vector<8x128xf32>
    %14 = arith.mulf %8, %8 : vector<16x8x128xf32>
    %cst_13 = arith.constant dense<0.000000e+00> : vector<8x128xf32>
    %15 = vector.multi_reduction <add>, %14, %cst_13 [0] : vector<16x8x128xf32> to vector<8x128xf32>
    %16 = arith.addf %13, %15 : vector<8x128xf32>
    %c0_14 = arith.constant 0 : index
    %c0_15 = arith.constant 0 : index
    %17 = vector.load %arg8[%c0_14, %c0_15] : memref<8x128xf32, #tpu.memory_space<vmem>>, vector<8x128xf32>
    tpu.vector_store %arg8[%c0_14, %c0_15], %16 {strides = array<i32>} : memref<8x128xf32, #tpu.memory_space<vmem>>, vector<8x128xf32>,
    %c0_i32_16 = arith.constant 0 : i32
    %18 = arith.cmpi eq, %arg1, %c0_i32_16 : i32
    %19 = arith.extui %18 : i1 to i32
    %c0_i32_17 = arith.constant 0 : i32
    %20 = arith.cmpi ne, %19, %c0_i32_17 : i32
    scf.if %20 {
      %c0_18 = arith.constant 0 : index
      %c0_19 = arith.constant 0 : index
      %21 = vector.load %arg7[%c0_18, %c0_19] : memref<8x128xf32, #tpu.memory_space<vmem>>, vector<8x128xf32>
      %c0_20 = arith.constant 0 : index
      %c0_21 = arith.constant 0 : index
      %22 = vector.load %arg5[%c0_20, %c0_21] : memref<8x128xf32, #tpu.memory_space<vmem>>, vector<8x128xf32>
      tpu.vector_store %arg5[%c0_20, %c0_21], %21 {strides = array<i32>} : memref<8x128xf32, #tpu.memory_space<vmem>>, vector<8x128xf32>,
      %c0_22 = arith.constant 0 : index
      %c0_23 = arith.constant 0 : index
      %23 = vector.load %arg8[%c0_22, %c0_23] : memref<8x128xf32, #tpu.memory_space<vmem>>, vector<8x128xf32>
      %c0_24 = arith.constant 0 : index
      %c0_25 = arith.constant 0 : index
      %24 = vector.load %arg6[%c0_24, %c0_25] : memref<8x128xf32, #tpu.memory_space<vmem>>, vector<8x128xf32>
      tpu.vector_store %arg6[%c0_24, %c0_25], %23 {strides = array<i32>} : memref<8x128xf32, #tpu.memory_space<vmem>>, vector<8x128xf32>,
    } else {
    }
    return
  }
  func.func @transform_0(%arg0: i32, %arg1: i32) -> (i32, i32) {
    %c1_i32 = arith.constant 1 : i32
    %0 = arith.muli %arg0, %c1_i32 : i32
    %1 = arith.addi %0, %arg1 : i32
    %c0_i32 = arith.constant 0 : i32
    %c0_i32_0 = arith.constant 0 : i32
    return %1, %c0_i32 : i32, i32
  }
  func.func @transform_1(%arg0: i32, %arg1: i32) -> (i32, i32) {
    %c0_i32 = arith.constant 0 : i32
    %c0_i32_0 = arith.constant 0 : i32
    %c0_i32_1 = arith.constant 0 : i32
    return %c0_i32, %c0_i32_0 : i32, i32
  }
  func.func @transform_2(%arg0: i32, %arg1: i32) -> (i32, i32) {
    %c1_i32 = arith.constant 1 : i32
    %0 = arith.muli %arg0, %c1_i32 : i32
    %1 = arith.addi %0, %arg1 : i32
    %c0_i32 = arith.constant 0 : i32
    %c0_i32_0 = arith.constant 0 : i32
    return %1, %c0_i32 : i32, i32
  }
  func.func @transform_3(%arg0: i32, %arg1: i32) -> (i32, i32) {
    %c0_i32 = arith.constant 0 : i32
    %c0_i32_0 = arith.constant 0 : i32
    return %arg0, %c0_i32 : i32, i32
  }
  func.func @transform_4(%arg0: i32, %arg1: i32) -> (i32, i32) {
    %c0_i32 = arith.constant 0 : i32
    %c0_i32_0 = arith.constant 0 : i32
    return %arg0, %c0_i32 : i32, i32
  }
}

</mosaic_0001>

<llo_original>
// kernel: tpu_custom_call.1
$region0: #{tpu_custom_call.1}
  #allocation0 [shape = 'u32[]', space=smem, size = 0x4, offset = 0x4, fixed_abs, tag = 'smem constant byte address 0x4 - core index']
  #allocation1 [shape = 'u32[144,128]{1,0:T(1,128)}', space=vmem, size = 0x12000, scoped, tag = 'internal scratch']
  #allocation2 [shape = 'f32[8,128]{1,0:T(8,128)}', space=vmem, size = 0x1000, scoped, tag = 'scratch operand']
  #allocation3 [shape = 'f32[8,128]{1,0:T(8,128)}', space=vmem, size = 0x1000, scoped, tag = 'scratch operand']
  %s0 = inlined_call_operand.hbm [shape: bf16[128,128], index: 0, kind: input, shape index: {}]
  %s1 = inlined_call_operand.hbm [shape: bf16[128,128], index: 1, kind: input, shape index: {}]
  %s2 = inlined_call_operand.hbm [shape: bf16[128,128], index: 2, kind: output, shape index: {0}]
  %s3 = inlined_call_operand.hbm [shape: f32[8,128], index: 3, kind: output, shape index: {1}]
  %s4 = inlined_call_operand.hbm [shape: f32[8,128], index: 4, kind: output, shape index: {2}]
  %5 = xla_tuple %s2, %s3, %s4
  %s6 = sld [smem:[#allocation0]]
  $region50: #{tpu_custom_call.1} parent=0
    _
  %s8 = ssub.s32 1, %s6
  %s9 = scalar_select 0, %s8, %s6
  $region1: #{tpu_custom_call.1} parent=0
    #allocation4 [shape = 'u8[32768]{0}', space=vmem, size = 0x8000, scoped, tag = 'input window, operand 0, single buffered']
    #allocation5 [shape = 's32[1]{0}', space=sflag, size = 0x4, scoped, tag = 'scoped memory for tpu_custom_call.1']
    #allocation6 [shape = 's32[1]{0}', space=sflag, size = 0x4, scoped, tag = 'scoped memory for tpu_custom_call.1']
    #allocation7 [shape = 'u8[32768]{0}', space=vmem, size = 0x8000, scoped, tag = 'input window, operand 1, single buffered']
    #allocation8 [shape = 's32[1]{0}', space=sflag, size = 0x4, scoped, tag = 'scoped memory for tpu_custom_call.1']
    #allocation9 [shape = 'u8[32768]{0}', space=vmem, size = 0x8000, scoped, tag = 'output window, operand 0, single buffered']
    #allocation10 [shape = 'u8[4096]{0}', space=vmem, size = 0x1000, scoped, tag = 'output window, operand 1, single buffered']
    #allocation11 [shape = 's32[1]{0}', space=sflag, size = 0x4, scoped, tag = 'scoped memory for tpu_custom_call.1']
    #allocation12 [shape = 'u8[4096]{0}', space=vmem, size = 0x1000, scoped, tag = 'output window, operand 2, single buffered']
    %10 = vsyncpa [#allocation5], 0
    %11 = vsyncpa [#allocation8], 0
    %12 = vsyncpa [#allocation6], 0
    %13 = vsyncpa [#allocation11], 0
    // Predicated region
    $region2: #{tpu_custom_call.1} parent=1 // pred_check
      _
    $region3: #{tpu_custom_call.1} parent=1 // pred_check_branch
      %15 = sbr.rel (0) target = $region5
    $region4: #{tpu_custom_call.1} parent=1 // pred_region
      %s16 = sadd.s32 0, 0
      %s17 = smul.u32 16, %s16
      %s19 = ssub.s32 1024, 1024
      %20 = vsyncadd [#allocation5], %s19
      %s21 = smul.addr %s17, 64
      %s22 = scalar_lea.hbm %s0, %s21
      %s23 = sshll.u32 [#allocation4], 4
      %s24 = int_to_ptr.vmem [resolvable:$true] %s23
      %29 = dma.hbm_to_vmem [thread:$0]  %s22, 1024, %s24, [#allocation5], 64, 64, 4
    $region5: #{tpu_custom_call.1} parent=1 // pred_fallthru
      _
    // Predicated region
    $region6: #{tpu_custom_call.1} parent=1 // pred_check
      _
    $region7: #{tpu_custom_call.1} parent=1 // pred_check_branch
      %31 = sbr.rel (0) target = $region9
    $region8: #{tpu_custom_call.1} parent=1 // pred_region
      %s33 = ssub.s32 1024, 1024
      %34 = vsyncadd [#allocation8], %s33
      %s35 = sshll.u32 [#allocation7], 4
      %s36 = int_to_ptr.vmem [resolvable:$true] %s35
      %41 = dma.hbm_to_vmem [thread:$0]  %s1, 1024, %s36, [#allocation8], 64, 64, 4
    $region9: #{tpu_custom_call.1} parent=1 // pred_fallthru
      _
    // Predicated region
    $region10: #{tpu_custom_call.1} parent=1 // pred_check
      _
    $region11: #{tpu_custom_call.1} parent=1 // pred_check_branch
      %43 = sbr.rel (0) target = $region13
    $region12: #{tpu_custom_call.1} parent=1 // pred_region
      %44 = dma.done [#allocation5], 1024
    $region13: #{tpu_custom_call.1} parent=1 // pred_fallthru
      _
    // Predicated region
    $region14: #{tpu_custom_call.1} parent=1 // pred_check
      _
    $region15: #{tpu_custom_call.1} parent=1 // pred_check_branch
      %46 = sbr.rel (0) target = $region17
    $region16: #{tpu_custom_call.1} parent=1 // pred_region
      %47 = dma.done [#allocation8], 1024
    $region17: #{tpu_custom_call.1} parent=1 // pred_fallthru
      _
    %s48 = sadd.s32 0, 0
    %s49 = smul.u32 16, %s48
    %s50 = sadd.s32 0, 0
    %s51 = smul.u32 16, %s50
    %p53 = scmp.eq.s32.totalorder 0, 0
    // Predicated region
    $region18: #{tpu_custom_call.1} parent=1 // pred_check
      %p54 = pneg %p53
    $region19: #{tpu_custom_call.1} parent=1 // pred_check_branch
      %56 = sbr.rel (%p54) target = $region21
    $region20: #{tpu_custom_call.1} parent=1 // pred_region
      %57 = vst [vmem:[#allocation2] sm:$0xff] 0.0
      %58 = vst [vmem:[#allocation3] sm:$0xff] 0.0
    $region21: #{tpu_custom_call.1} parent=1 // pred_fallthru
      _
    %v59 = vld [vmem:[#allocation4] sm:$0xf]
    %v60 = vld [vmem:[#allocation4 + $0x4] sm:$0xf]
    %v61 = vld [vmem:[#allocation4 + $0x8] sm:$0xf]
    %v62 = vld [vmem:[#allocation4 + $0xc] sm:$0xf]
    %v63 = vld [vmem:[#allocation4 + $0x10] sm:$0xf]
    %v64 = vld [vmem:[#allocation4 + $0x14] sm:$0xf]
    %v65 = vld [vmem:[#allocation4 + $0x18] sm:$0xf]
    %v66 = vld [vmem:[#allocation4 + $0x1c] sm:$0xf]
    %v67 = vld [vmem:[#allocation4 + $0x20] sm:$0xf]
    %v68 = vld [vmem:[#allocation4 + $0x24] sm:$0xf]
    %v69 = vld [vmem:[#allocation4 + $0x28] sm:$0xf]
    %v70 = vld [vmem:[#allocation4 + $0x2c] sm:$0xf]
    %v71 = vld [vmem:[#allocation4 + $0x30] sm:$0xf]
    %v72 = vld [vmem:[#allocation4 + $0x34] sm:$0xf]
    %v73 = vld [vmem:[#allocation4 + $0x38] sm:$0xf]
    %v74 = vld [vmem:[#allocation4 + $0x3c] sm:$0xf]
    %v75 = vld [vmem:[#allocation7] sm:$0xf]
    %v76 = vld [vmem:[#allocation7 + $0x4] sm:$0xf]
    %v77 = vld [vmem:[#allocation7 + $0x8] sm:$0xf]
    %v78 = vld [vmem:[#allocation7 + $0xc] sm:$0xf]
    %v79 = vld [vmem:[#allocation7 + $0x10] sm:$0xf]
    %v80 = vld [vmem:[#allocation7 + $0x14] sm:$0xf]
    %v81 = vld [vmem:[#allocation7 + $0x18] sm:$0xf]
    %v82 = vld [vmem:[#allocation7 + $0x1c] sm:$0xf]
    %v83 = vld [vmem:[#allocation7 + $0x20] sm:$0xf]
    %v84 = vld [vmem:[#allocation7 + $0x24] sm:$0xf]
    %v85 = vld [vmem:[#allocation7 + $0x28] sm:$0xf]
    %v86 = vld [vmem:[#allocation7 + $0x2c] sm:$0xf]
    %v87 = vld [vmem:[#allocation7 + $0x30] sm:$0xf]
    %v88 = vld [vmem:[#allocation7 + $0x34] sm:$0xf]
    %v89 = vld [vmem:[#allocation7 + $0x38] sm:$0xf]
    %v90 = vld [vmem:[#allocation7 + $0x3c] sm:$0xf]
    %v107 = vunpack.c.l.b16 %v59
    %v108 = vunpack.c.l.b16 %v60
    %v109 = vunpack.c.l.b16 %v61
    %v110 = vunpack.c.l.b16 %v62
    %v111 = vunpack.c.l.b16 %v63
    %v112 = vunpack.c.l.b16 %v64
    %v113 = vunpack.c.l.b16 %v65
    %v114 = vunpack.c.l.b16 %v66
    %v115 = vunpack.c.l.b16 %v67
    %v116 = vunpack.c.l.b16 %v68
    %v117 = vunpack.c.l.b16 %v69
    %v118 = vunpack.c.l.b16 %v70
    %v119 = vunpack.c.l.b16 %v71
    %v120 = vunpack.c.l.b16 %v72
    %v121 = vunpack.c.l.b16 %v73
    %v122 = vunpack.c.l.b16 %v74
    %v123 = vpack.c.b16 %v108, %v107
    %v124 = vpack.c.b16 %v110, %v109
    %v125 = vpack.c.b16 %v112, %v111
    %v126 = vpack.c.b16 %v114, %v113
    %v127 = vpack.c.b16 %v116, %v115
    %v128 = vpack.c.b16 %v118, %v117
    %v129 = vpack.c.b16 %v120, %v119
    %v130 = vpack.c.b16 %v122, %v121
    %v155 = vunpack.c.l.b16 %v75
    %v156 = vunpack.c.l.b16 %v76
    %v157 = vunpack.c.l.b16 %v77
    %v158 = vunpack.c.l.b16 %v78
    %v159 = vunpack.c.l.b16 %v79
    %v160 = vunpack.c.l.b16 %v80
    %v161 = vunpack.c.l.b16 %v81
    %v162 = vunpack.c.l.b16 %v82
    %v163 = vunpack.c.l.b16 %v83
    %v164 = vunpack.c.l.b16 %v84
    %v165 = vunpack.c.l.b16 %v85
    %v166 = vunpack.c.l.b16 %v86
    %v167 = vunpack.c.l.b16 %v87
    %v168 = vunpack.c.l.b16 %v88
    %v169 = vunpack.c.l.b16 %v89
    %v170 = vunpack.c.l.b16 %v90
    %v171 = vpack.c.b16 %v156, %v155
    %v172 = vpack.c.b16 %v158, %v157
    %v173 = vpack.c.b16 %v160, %v159
    %v174 = vpack.c.b16 %v162, %v161
    %v175 = vpack.c.b16 %v164, %v163
    %v176 = vpack.c.b16 %v166, %v165
    %v177 = vpack.c.b16 %v168, %v167
    %v178 = vpack.c.b16 %v170, %v169
    %187 = vmatprep.subr.bf16.mxu0 0
    %188 = vmatpush1.bf16.msra.mxu0 %v178
    %189 = vmatprep.subr.bf16.mxu0 0
    %190 = vmatpush1.bf16.msra.mxu0 %v177
    %191 = vmatprep.subr.bf16.mxu0 0
    %192 = vmatpush1.bf16.msra.mxu0 %v176
    %193 = vmatprep.subr.bf16.mxu0 0
    %194 = vmatpush1.bf16.msra.mxu0 %v175
    %195 = vmatprep.subr.bf16.mxu0 0
    %196 = vmatpush1.bf16.msra.mxu0 %v174
    %197 = vmatprep.subr.bf16.mxu0 0
    %198 = vmatpush1.bf16.msra.mxu0 %v173
    %199 = vmatprep.subr.bf16.mxu0 0
    %200 = vmatpush1.bf16.msra.mxu0 %v172
    %201 = vmatprep.subr.bf16.mxu0 0
    %202 = vmatpush1.bf16.msra.mxu0 %v171
    %203 = vmatprep.subr.bf16.mxu0 0
    %204 = vmatpush2.bf16.msra.mxu0 0
    %205 = vmatprep.subr.bf16.mxu0 0
    %206 = vmatpush2.bf16.msra.mxu0 0
    %207 = vmatprep.subr.bf16.mxu0 0
    %208 = vmatpush2.bf16.msra.mxu0 0
    %209 = vmatprep.subr.bf16.mxu0 0
    %210 = vmatpush2.bf16.msra.mxu0 0
    %211 = vmatprep.subr.bf16.mxu0 0
    %212 = vmatpush2.bf16.msra.mxu0 0
    %213 = vmatprep.subr.bf16.mxu0 0
    %214 = vmatpush2.bf16.msra.mxu0 0
    %215 = vmatprep.subr.bf16.mxu0 0
    %216 = vmatpush2.bf16.msra.mxu0 0
    %217 = vmatprep.subr.bf16.mxu0 0
    %218 = vmatpush2.bf16.msra.mxu0 0
    %219 = vmatprep.mubr.bf16.mxu0 0
    %220 = vmatmul.mubr.bf16.gmra.mxu0 %v123
    %v221 = vpop.f32.mrf.mxu0
    %v222 = vadd.f32 0.0, %v221
    %v223 = vpop.f32.mrf.mxu0
    %v224 = vpop.f32.mrf.mxu0
    %v225 = vadd.f32 0.0, %v224
    %v226 = vpop.f32.mrf.mxu0
    %227 = vmatprep.mubr.bf16.mxu0 0
    %228 = vmatmul.mubr.bf16.gmra.mxu0 %v124
    %v229 = vpop.f32.mrf.mxu0
    %v230 = vadd.f32 0.0, %v229
    %v231 = vpop.f32.mrf.mxu0
    %v232 = vpop.f32.mrf.mxu0
    %v233 = vadd.f32 0.0, %v232
    %v234 = vpop.f32.mrf.mxu0
    %235 = vmatprep.mubr.bf16.mxu0 0
    %236 = vmatmul.mubr.bf16.gmra.mxu0 %v125
    %v237 = vpop.f32.mrf.mxu0
    %v238 = vadd.f32 0.0, %v237
    %v239 = vpop.f32.mrf.mxu0
    %v240 = vpop.f32.mrf.mxu0
    %v241 = vadd.f32 0.0, %v240
    %v242 = vpop.f32.mrf.mxu0
    %243 = vmatprep.mubr.bf16.mxu0 0
    %244 = vmatmul.mubr.bf16.gmra.mxu0 %v126
    %v245 = vpop.f32.mrf.mxu0
    %v246 = vadd.f32 0.0, %v245
    %v247 = vpop.f32.mrf.mxu0
    %v248 = vpop.f32.mrf.mxu0
    %v249 = vadd.f32 0.0, %v248
    %v250 = vpop.f32.mrf.mxu0
    %251 = vmatprep.mubr.bf16.mxu0 0
    %252 = vmatmul.mubr.bf16.gmra.mxu0 %v127
    %v253 = vpop.f32.mrf.mxu0
    %v254 = vadd.f32 0.0, %v253
    %v255 = vpop.f32.mrf.mxu0
    %v256 = vpop.f32.mrf.mxu0
    %v257 = vadd.f32 0.0, %v256
    %v258 = vpop.f32.mrf.mxu0
    %259 = vmatprep.mubr.bf16.mxu0 0
    %260 = vmatmul.mubr.bf16.gmra.mxu0 %v128
    %v261 = vpop.f32.mrf.mxu0
    %v262 = vadd.f32 0.0, %v261
    %v263 = vpop.f32.mrf.mxu0
    %v264 = vpop.f32.mrf.mxu0
    %v265 = vadd.f32 0.0, %v264
    %v266 = vpop.f32.mrf.mxu0
    %267 = vmatprep.mubr.bf16.mxu0 0
    %268 = vmatmul.mubr.bf16.gmra.mxu0 %v129
    %v269 = vpop.f32.mrf.mxu0
    %v270 = vadd.f32 0.0, %v269
    %v271 = vpop.f32.mrf.mxu0
    %v272 = vpop.f32.mrf.mxu0
    %v273 = vadd.f32 0.0, %v272
    %v274 = vpop.f32.mrf.mxu0
    %275 = vmatprep.mubr.bf16.mxu0 0
    %276 = vmatmul.mubr.bf16.gmra.mxu0 %v130
    %v277 = vpop.f32.mrf.mxu0
    %v278 = vadd.f32 0.0, %v277
    %v279 = vpop.f32.mrf.mxu0
    %v280 = vpop.f32.mrf.mxu0
    %v281 = vadd.f32 0.0, %v280
    %v282 = vpop.f32.mrf.mxu0
    %283 = vdwg.mxu0
    %v284 = vpack.c.bf16 %v225, %v222
    %v285 = vpack.c.bf16 %v233, %v230
    %v286 = vpack.c.bf16 %v241, %v238
    %v287 = vpack.c.bf16 %v249, %v246
    %v288 = vpack.c.bf16 %v257, %v254
    %v289 = vpack.c.bf16 %v265, %v262
    %v290 = vpack.c.bf16 %v273, %v270
    %v291 = vpack.c.bf16 %v281, %v278
    %v300 = vunpack.c.l.b16 %v284
    %v301 = vunpack.c.h.b16 %v284
    %v302 = vunpack.c.l.b16 %v285
    %v303 = vunpack.c.h.b16 %v285
    %v304 = vunpack.c.l.b16 %v286
    %v305 = vunpack.c.h.b16 %v286
    %v306 = vunpack.c.l.b16 %v287
    %v307 = vunpack.c.h.b16 %v287
    %v308 = vunpack.c.l.b16 %v288
    %v309 = vunpack.c.h.b16 %v288
    %v310 = vunpack.c.l.b16 %v289
    %v311 = vunpack.c.h.b16 %v289
    %v312 = vunpack.c.l.b16 %v290
    %v313 = vunpack.c.h.b16 %v290
    %v314 = vunpack.c.l.b16 %v291
    %v315 = vunpack.c.h.b16 %v291
    %v316 = vpack.c.b16 %v300, %v300
    %v317 = vpack.c.b16 %v301, %v301
    %v318 = vpack.c.b16 %v302, %v302
    %v319 = vpack.c.b16 %v303, %v303
    %v320 = vpack.c.b16 %v304, %v304
    %v321 = vpack.c.b16 %v305, %v305
    %v322 = vpack.c.b16 %v306, %v306
    %v323 = vpack.c.b16 %v307, %v307
    %v324 = vpack.c.b16 %v308, %v308
    %v325 = vpack.c.b16 %v309, %v309
    %v326 = vpack.c.b16 %v310, %v310
    %v327 = vpack.c.b16 %v311, %v311
    %v328 = vpack.c.b16 %v312, %v312
    %v329 = vpack.c.b16 %v313, %v313
    %v330 = vpack.c.b16 %v314, %v314
    %v331 = vpack.c.b16 %v315, %v315
    %348 = vst [vmem:[#allocation9] sm:$0xf] %v316
    %349 = vst [vmem:[#allocation9 + $0x4] sm:$0xf] %v317
    %350 = vst [vmem:[#allocation9 + $0x8] sm:$0xf] %v318
    %351 = vst [vmem:[#allocation9 + $0xc] sm:$0xf] %v319
    %352 = vst [vmem:[#allocation9 + $0x10] sm:$0xf] %v320
    %353 = vst [vmem:[#allocation9 + $0x14] sm:$0xf] %v321
    %354 = vst [vmem:[#allocation9 + $0x18] sm:$0xf] %v322
    %355 = vst [vmem:[#allocation9 + $0x1c] sm:$0xf] %v323
    %356 = vst [vmem:[#allocation9 + $0x20] sm:$0xf] %v324
    %357 = vst [vmem:[#allocation9 + $0x24] sm:$0xf] %v325
    %358 = vst [vmem:[#allocation9 + $0x28] sm:$0xf] %v326
    %359 = vst [vmem:[#allocation9 + $0x2c] sm:$0xf] %v327
    %360 = vst [vmem:[#allocation9 + $0x30] sm:$0xf] %v328
    %361 = vst [vmem:[#allocation9 + $0x34] sm:$0xf] %v329
    %362 = vst [vmem:[#allocation9 + $0x38] sm:$0xf] %v330
    %363 = vst [vmem:[#allocation9 + $0x3c] sm:$0xf] %v331
    %v364 = vld [vmem:[#allocation2] sm:$0xff]
    %v365 = vadd.f32 %v222, %v225
    %v366 = vadd.f32 %v365, %v230
    %v367 = vadd.f32 %v366, %v233
    %v368 = vadd.f32 %v367, %v238
    %v369 = vadd.f32 %v368, %v241
    %v370 = vadd.f32 %v369, %v246
    %v371 = vadd.f32 %v370, %v249
    %v372 = vadd.f32 %v371, %v254
    %v373 = vadd.f32 %v372, %v257
    %v374 = vadd.f32 %v373, %v262
    %v375 = vadd.f32 %v374, %v265
    %v376 = vadd.f32 %v375, %v270
    %v377 = vadd.f32 %v376, %v273
    %v378 = vadd.f32 %v377, %v278
    %v379 = vadd.f32 %v378, %v281
    %v380 = vadd.f32 %v364, %v379
    %381 = vst [vmem:[#allocation2] sm:$0xff] %v380
    %v382 = vld [vmem:[#allocation3] sm:$0xff]
    %v383 = vmul.f32 %v222, %v222
    %v384 = vmul.f32 %v225, %v225
    %v385 = vmul.f32 %v230, %v230
    %v386 = vmul.f32 %v233, %v233
    %v387 = vmul.f32 %v238, %v238
    %v388 = vmul.f32 %v241, %v241
    %v389 = vmul.f32 %v246, %v246
    %v390 = vmul.f32 %v249, %v249
    %v391 = vmul.f32 %v254, %v254
    %v392 = vmul.f32 %v257, %v257
    %v393 = vmul.f32 %v262, %v262
    %v394 = vmul.f32 %v265, %v265
    %v395 = vmul.f32 %v270, %v270
    %v396 = vmul.f32 %v273, %v273
    %v397 = vmul.f32 %v278, %v278
    %v398 = vmul.f32 %v281, %v281
    %v399 = vadd.f32 %v383, %v384
    %v400 = vadd.f32 %v399, %v385
    %v401 = vadd.f32 %v400, %v386
    %v402 = vadd.f32 %v401, %v387
    %v403 = vadd.f32 %v402, %v388
    %v404 = vadd.f32 %v403, %v389
    %v405 = vadd.f32 %v404, %v390
    %v406 = vadd.f32 %v405, %v391
    %v407 = vadd.f32 %v406, %v392
    %v408 = vadd.f32 %v407, %v393
    %v409 = vadd.f32 %v408, %v394
    %v410 = vadd.f32 %v409, %v395
    %v411 = vadd.f32 %v410, %v396
    %v412 = vadd.f32 %v411, %v397
    %v413 = vadd.f32 %v412, %v398
    %v414 = vadd.f32 %v382, %v413
    %415 = vst [vmem:[#allocation3] sm:$0xff] %v414
    // Predicated region
    $region22: #{tpu_custom_call.1} parent=1 // pred_check
      %p416 = pneg %p53
    $region23: #{tpu_custom_call.1} parent=1 // pred_check_branch
      %418 = sbr.rel (%p416) target = $region25
    $region24: #{tpu_custom_call.1} parent=1 // pred_region
      %v419 = vld [vmem:[#allocation2] sm:$0xff]
      %420 = vst [vmem:[#allocation10] sm:$0xff] %v419
      %v421 = vld [vmem:[#allocation3] sm:$0xff]
      %422 = vst [vmem:[#allocation12] sm:$0xff] %v421
    $region25: #{tpu_custom_call.1} parent=1 // pred_fallthru
      _
    // Predicated region
    $region26: #{tpu_custom_call.1} parent=1 // pred_check
      _
    $region27: #{tpu_custom_call.1} parent=1 // pred_check_branch
      %424 = sbr.rel (0) target = $region29
    $region28: #{tpu_custom_call.1} parent=1 // pred_region
      %s425 = sadd.s32 0, 0
      %s426 = smul.u32 16, %s425
      %s428 = ssub.s32 1024, 1024
      %429 = vsyncadd [#allocation6], %s428
      %s430 = smul.addr %s426, 64
      %s431 = scalar_lea.hbm %s2, %s430
      %s432 = sshll.u32 [#allocation9], 4
      %s433 = int_to_ptr.vmem [resolvable:$true] %s432
      %438 = dma.vmem_to_hbm [thread:$0]  %s433, 1024, %s431, [#allocation6], 64, 64, 4
    $region29: #{tpu_custom_call.1} parent=1 // pred_fallthru
      _
    // Predicated region
    $region30: #{tpu_custom_call.1} parent=1 // pred_check
      _
    $region31: #{tpu_custom_call.1} parent=1 // pred_check_branch
      %440 = sbr.rel (0) target = $region33
    $region32: #{tpu_custom_call.1} parent=1 // pred_region
      %s442 = ssub.s32 128, 128
      %443 = vsyncadd [#allocation11], %s442
      %s445 = sshll.u32 [#allocation10], 4
      %s446 = int_to_ptr.vmem [resolvable:$true] %s445
      %448 = dma.vmem_to_hbm [thread:$0]  %s446, 128, %s3, [#allocation11]
    $region33: #{tpu_custom_call.1} parent=1 // pred_fallthru
      _
    // Predicated region
    $region34: #{tpu_custom_call.1} parent=1 // pred_check
      _
    $region35: #{tpu_custom_call.1} parent=1 // pred_check_branch
      %450 = sbr.rel (0) target = $region37
    $region36: #{tpu_custom_call.1} parent=1 // pred_region
      %s452 = ssub.s32 128, 128
      %453 = vsyncadd [#allocation11], %s452
      %s455 = sshll.u32 [#allocation12], 4
      %s456 = int_to_ptr.vmem [resolvable:$true] %s455
      %458 = dma.vmem_to_hbm [thread:$0]  %s456, 128, %s4, [#allocation11]
    $region37: #{tpu_custom_call.1} parent=1 // pred_fallthru
      _
    // Predicated region
    $region38: #{tpu_custom_call.1} parent=1 // pred_check
      _
    $region39: #{tpu_custom_call.1} parent=1 // pred_check_branch
      %460 = sbr.rel (0) target = $region41
    $region40: #{tpu_custom_call.1} parent=1 // pred_region
      %461 = dma.done [#allocation6], 1024
    $region41: #{tpu_custom_call.1} parent=1 // pred_fallthru
      _
    // Predicated region
    $region42: #{tpu_custom_call.1} parent=1 // pred_check
      _
    $region43: #{tpu_custom_call.1} parent=1 // pred_check_branch
      %463 = sbr.rel (0) target = $region45
    $region44: #{tpu_custom_call.1} parent=1 // pred_region
      %464 = dma.done [#allocation11], 128
    $region45: #{tpu_custom_call.1} parent=1 // pred_fallthru
      _
    // Predicated region
    $region46: #{tpu_custom_call.1} parent=1 // pred_check
      _
    $region47: #{tpu_custom_call.1} parent=1 // pred_check_branch
      %466 = sbr.rel (0) target = $region49
    $region48: #{tpu_custom_call.1} parent=1 // pred_region
      %467 = dma.done [#allocation11], 128
    $region49: #{tpu_custom_call.1} parent=1 // pred_fallthru
      _
    %468 = vsyncpa [#allocation5], 1
    %469 = vsyncpa [#allocation8], 1
    %470 = vsyncpa [#allocation6], 1
    %471 = vsyncpa [#allocation11], 1

</llo_original>
